<compile_context>
chip_gen: v7x
topology: tpu7x:2x2x1
jax: 0.10.0
libtpu: 0.0.40
codegen_flags: <defaults>
</compile_context>

<pallas_src>
import jax
import jax.numpy as jnp
from jax import lax
from jax.experimental import pallas as pl
from jax.experimental.pallas import tpu as pltpu


def masked_mlp_kernel(x_ref, w1_ref, w2_ref, w3_ref, o_ref):
    """One batch tile of the masked MLP, batch on the lane axis.

    x_ref : (fin, TB)  activations, batch on lanes
    w1_ref: (H, fin)   mask-folded layer-1 weight (transposed)
    w2_ref: (H, H)     mask-folded layer-2 weight (transposed)
    w3_ref: (H, 1)     mask-folded layer-3 weight (column)
    o_ref : (1, TB)    output, batch on lanes (lane-dense store)
    """
    x = x_ref[...]                       # (fin, TB)
    fin = x_ref.shape[0]                 # static

    # Layer 1: MaskedLinear(in, H) + ReLU  -> (H, TB)
    if fin <= 8:
        # Tiny contraction: unrolled VPU outer-product accumulation instead of
        # a >96%-zero-padded MXU pass sitting on the latency critical path.
        w1 = w1_ref[...]                 # (H, fin)
        h = w1[:, 0:1] * x[0:1, :]
        for k in range(1, fin):          # static unroll (fin <= 8)
            h = h + w1[:, k:k + 1] * x[k:k + 1, :]
    else:
        h = jnp.dot(w1_ref[...], x,
                    preferred_element_type=jnp.float32,
                    precision=lax.Precision.HIGHEST)
    h = jnp.maximum(h, 0.0)

    # Layer 2: MaskedLinear(H, H) + ReLU   -> (H, TB)  (MXU, precision pinned)
    h = jnp.dot(w2_ref[...], h,
                preferred_element_type=jnp.float32,
                precision=lax.Precision.HIGHEST)
    h = jnp.maximum(h, 0.0)

    # Layer 3: MaskedLinear(H, 1), bias=False.  N=1 MXU matmul replaced by a
    # VPU broadcast-multiply + sublane (XLU) reduction over the hidden axis.
    o_ref[...] = jnp.sum(h * w3_ref[...], axis=0, keepdims=True).astype(o_ref.dtype)


def fold_masks_into_weights(params, dtype=jnp.float32):
    """One-time setup: fold the fixed binary masks into the weights and lay
    them out for the kernel (transposed so the kernel computes W @ x).

    NOTE (scale-up guardrails, not needed at H=32):
      * large H: pass dtype=jnp.bfloat16 here (MXU-native, halves weight DMA);
        keep preferred_element_type=f32 in the kernel.
      * v7x: if the resident f32 (H,H) w2t approaches the 32 MiB scoped VMEM
        budget (H ~ 2.8K), add a grid axis tiling layer-2 output rows with an
        f32 VMEM accumulator.
      * If masks/weights ever change (training), this fold must be re-run.
    """
    return {
        "w1t": (params["w1"] * params["m1"]).T.astype(dtype),   # (H, in)
        "w2t": (params["w2"] * params["m2"]).T.astype(dtype),   # (H, H)
        "w3":  (params["w3"] * params["m3"]).astype(dtype),     # (H, 1)
    }


def masked_net_forward(x_fm, folded, *, batch_tile=None):
    """Feature-major entry point (no wrapper transposes).

    x_fm  : (fin, B) f32 activations, batch on the lane axis.
    folded: mask-folded weights from fold_masks_into_weights.
    Returns (1, B) f32.
    """
    fin, B = x_fm.shape
    w1t, w2t, w3 = folded["w1t"], folded["w2t"], folded["w3"]
    H = w1t.shape[0]

    # Default: one grid step for the whole batch (rounded to 128 lanes),
    # capped at 2048 lanes per tile when B scales up.
    if batch_tile is None:
        batch_tile = min(pl.cdiv(B, 128) * 128, 2048)
    tb = batch_tile
    n_tiles = pl.cdiv(B, tb)
    bp = n_tiles * tb
    if bp != B:
        x_fm = jnp.pad(x_fm, ((0, 0), (0, bp - B)))

    # Megacore / 2-TC sharding only pays off with enough batch tiles to hide
    # the per-core fixed cost; otherwise run on a single TensorCore.
    semantics = ("parallel",) if n_tiles >= 4 else ("arbitrary",)

    out_fm = pl.pallas_call(
        masked_mlp_kernel,
        out_shape=jax.ShapeDtypeStruct((1, bp), jnp.float32),
        grid=(n_tiles,),
        in_specs=[
            # activations: tiled along the batch (lane) axis
            pl.BlockSpec((fin, tb), lambda i: (0, i)),
            # mask-folded weights: constant index_map -> stay VMEM-resident
            pl.BlockSpec((H, fin), lambda i: (0, 0)),
            pl.BlockSpec((H, H), lambda i: (0, 0)),
            pl.BlockSpec((H, 1), lambda i: (0, 0)),
        ],
        out_specs=pl.BlockSpec((1, tb), lambda i: (0, i)),
        compiler_params=pltpu.CompilerParams(
            dimension_semantics=semantics,
            # no-op on v6e/v7x (32 MiB scoped default); raises v5e's 16 MiB
            # default so bigger lane tiles / resident weights fit when scaled.
            vmem_limit_bytes=32 * 1024 * 1024,
        ),
    )(x_fm, w1t, w2t, w3)

    return out_fm[:, :B] if bp != B else out_fm


def masked_net_forward_batch_major(x, folded, **kw):
    """Drop-in for the PyTorch module API: x (B, fin) -> (B, 1).
    Costs one transpose round-trip each way; prefer masked_net_forward with a
    feature-major (fin, B) input when the caller controls the layout."""
    return masked_net_forward(x.T, folded, **kw).T


def init_params(key, input_size, hidden_size, pct_keep):
    """Deterministic synthetic init: Kaiming-uniform-ish weights + Bernoulli
    keep-masks, stored as (in, out) == PyTorch weight (out, in) transposed."""
    ks = jax.random.split(key, 6)

    def lin(k, fan_in, fan_out):
        bound = 1.0 / jnp.sqrt(jnp.float32(fan_in))
        return jax.random.uniform(k, (fan_in, fan_out), jnp.float32, -bound, bound)

    def mask(k, fan_in, fan_out):
        return jax.random.bernoulli(k, pct_keep, (fan_in, fan_out)).astype(jnp.float32)

    return {
        "w1": lin(ks[0], input_size, hidden_size),
        "m1": mask(ks[1], input_size, hidden_size),
        "w2": lin(ks[2], hidden_size, hidden_size),
        "m2": mask(ks[3], hidden_size, hidden_size),
        "w3": lin(ks[4], hidden_size, 1),
        "m3": mask(ks[5], hidden_size, 1),
    }


def reference_forward(x, p):
    """Pure-JAX reference with the PyTorch module's semantics (batch-major),
    matmul precision pinned so the tolerance check is generation-robust."""
    hp = lax.Precision.HIGHEST
    h = jnp.maximum(jnp.dot(x, p["w1"] * p["m1"], precision=hp), 0.0)
    h = jnp.maximum(jnp.dot(h, p["w2"] * p["m2"], precision=hp), 0.0)
    return jnp.dot(h, p["w3"] * p["m3"], precision=hp)       # (B, 1)


if __name__ == "__main__":
    key = jax.random.PRNGKey(0)
    k_x, k_p = jax.random.split(key)

    batch = 256          # batch lives on the 128-wide lane axis -> one 256-lane tile
    input_size = 4       # == x.size(1) in the PyTorch module
    hidden_size = 32     # multiple of 8 -> sublane-aligned in the (H, B) layout
    pct_keep = 0.6

    # Construct activations directly in feature-major (fin, B) layout so the
    # kernel path has zero wrapper-side transpose copies.
    x_fm = jax.random.normal(k_x, (input_size, batch), jnp.float32)
    params = init_params(k_p, input_size, hidden_size, pct_keep)
    folded = fold_masks_into_weights(params)   # one-time offline mask fold

    out_fm = masked_net_forward(x_fm, folded)  # (1, B)
    jax.block_until_ready(out_fm)

    ref = reference_forward(x_fm.T, params)    # (B, 1), same math / batch-major
    assert out_fm.shape == (1, batch)
    assert jnp.allclose(out_fm.T, ref, atol=1e-5, rtol=1e-5), \
        float(jnp.max(jnp.abs(out_fm.T - ref)))

    # Batch-major compat wrapper (module-equivalent API) agrees as well.
    out_bm = masked_net_forward_batch_major(x_fm.T, folded)
    jax.block_until_ready(out_bm)
    assert out_bm.shape == (batch, 1)
    assert jnp.allclose(out_bm, ref, atol=1e-5, rtol=1e-5)

    print("KERNEL_OK")
</pallas_src>

<mosaic_0001>
module attributes {stable_mosaic.version = 11 : i64} {
  func.func @masked_mlp_kernel(%arg0: i32, %arg1: memref<4x256xf32, #tpu.memory_space<vmem>>, %arg2: memref<32x4xf32, #tpu.memory_space<vmem>>, %arg3: memref<32x32xf32, #tpu.memory_space<vmem>>, %arg4: memref<32x1xf32, #tpu.memory_space<vmem>>, %arg5: memref<1x256xf32, #tpu.memory_space<vmem>>) attributes {dimension_semantics = [#tpu.dimension_semantics<arbitrary>], iteration_bounds = array<i64: 1>, scalar_prefetch = 0 : i64, scratch_operands = 0 : i64, tpu.core_type = #tpu.core_type<tc>, window_params = [{transform_indices = @transform_0, window_bounds = array<i64: 4, 256>}, {pipeline_mode = #tpu.pipeline_mode<synchronous>, transform_indices = @transform_1, window_bounds = array<i64: 32, 4>}, {pipeline_mode = #tpu.pipeline_mode<synchronous>, transform_indices = @transform_2, window_bounds = array<i64: 32, 32>}, {pipeline_mode = #tpu.pipeline_mode<synchronous>, transform_indices = @transform_3, window_bounds = array<i64: 32, 1>}, {transform_indices = @transform_4, window_bounds = array<i64: 1, 256>}]} {
    %c0 = arith.constant 0 : index
    %c0_0 = arith.constant 0 : index
    %0 = vector.load %arg1[%c0, %c0_0] : memref<4x256xf32, #tpu.memory_space<vmem>>, vector<4x256xf32>
    %c0_1 = arith.constant 0 : index
    %c0_2 = arith.constant 0 : index
    %1 = vector.load %arg2[%c0_1, %c0_2] : memref<32x4xf32, #tpu.memory_space<vmem>>, vector<32x4xf32>
    %2 = vector.extract_strided_slice %1 {offsets = [0, 0], sizes = [32, 1], strides = [1, 1]} : vector<32x4xf32> to vector<32x1xf32>
    %3 = vector.extract_strided_slice %0 {offsets = [0, 0], sizes = [1, 256], strides = [1, 1]} : vector<4x256xf32> to vector<1x256xf32>
    %4 = vector.broadcast %2 : vector<32x1xf32> to vector<32x256xf32>
    %5 = vector.broadcast %3 : vector<1x256xf32> to vector<32x256xf32>
    %6 = arith.mulf %4, %5 : vector<32x256xf32>
    %7 = vector.extract_strided_slice %1 {offsets = [0, 1], sizes = [32, 1], strides = [1, 1]} : vector<32x4xf32> to vector<32x1xf32>
    %8 = vector.extract_strided_slice %0 {offsets = [1, 0], sizes = [1, 256], strides = [1, 1]} : vector<4x256xf32> to vector<1x256xf32>
    %9 = vector.broadcast %7 : vector<32x1xf32> to vector<32x256xf32>
    %10 = vector.broadcast %8 : vector<1x256xf32> to vector<32x256xf32>
    %11 = arith.mulf %9, %10 : vector<32x256xf32>
    %12 = arith.addf %6, %11 : vector<32x256xf32>
    %13 = vector.extract_strided_slice %1 {offsets = [0, 2], sizes = [32, 1], strides = [1, 1]} : vector<32x4xf32> to vector<32x1xf32>
    %14 = vector.extract_strided_slice %0 {offsets = [2, 0], sizes = [1, 256], strides = [1, 1]} : vector<4x256xf32> to vector<1x256xf32>
    %15 = vector.broadcast %13 : vector<32x1xf32> to vector<32x256xf32>
    %16 = vector.broadcast %14 : vector<1x256xf32> to vector<32x256xf32>
    %17 = arith.mulf %15, %16 : vector<32x256xf32>
    %18 = arith.addf %12, %17 : vector<32x256xf32>
    %19 = vector.extract_strided_slice %1 {offsets = [0, 3], sizes = [32, 1], strides = [1, 1]} : vector<32x4xf32> to vector<32x1xf32>
    %20 = vector.extract_strided_slice %0 {offsets = [3, 0], sizes = [1, 256], strides = [1, 1]} : vector<4x256xf32> to vector<1x256xf32>
    %21 = vector.broadcast %19 : vector<32x1xf32> to vector<32x256xf32>
    %22 = vector.broadcast %20 : vector<1x256xf32> to vector<32x256xf32>
    %23 = arith.mulf %21, %22 : vector<32x256xf32>
    %24 = arith.addf %18, %23 : vector<32x256xf32>
    %cst = arith.constant 0.000000e+00 : f32
    %25 = vector.broadcast %cst : f32 to vector<32x256xf32>
    %26 = arith.maximumf %24, %25 : vector<32x256xf32>
    %c0_3 = arith.constant 0 : index
    %c0_4 = arith.constant 0 : index
    %27 = vector.load %arg3[%c0_3, %c0_4] : memref<32x32xf32, #tpu.memory_space<vmem>>, vector<32x32xf32>
    %cst_5 = arith.constant dense<0.000000e+00> : vector<32x256xf32>
    %28 = tpu.matmul %27, %26, %cst_5 {dimension_numbers = #tpu.dot_dimension_numbers<[1], [0], [0], [1], [0, 0, 1, 1], [], []>, precision = #tpu.contract_precision<fp32>} : vector<32x32xf32>, vector<32x256xf32>, vector<32x256xf32> -> vector<32x256xf32>
    %cst_6 = arith.constant 0.000000e+00 : f32
    %29 = vector.broadcast %cst_6 : f32 to vector<32x256xf32>
    %30 = arith.maximumf %28, %29 : vector<32x256xf32>
    %c0_7 = arith.constant 0 : index
    %c0_8 = arith.constant 0 : index
    %31 = vector.load %arg4[%c0_7, %c0_8] : memref<32x1xf32, #tpu.memory_space<vmem>>, vector<32x1xf32>
    %32 = vector.broadcast %31 : vector<32x1xf32> to vector<32x256xf32>
    %33 = arith.mulf %30, %32 : vector<32x256xf32>
    %cst_9 = arith.constant dense<0.000000e+00> : vector<256xf32>
    %34 = vector.multi_reduction <add>, %33, %cst_9 [0] : vector<32x256xf32> to vector<256xf32>
    %35 = vector.shape_cast %34 : vector<256xf32> to vector<1x256xf32>
    %c0_10 = arith.constant 0 : index
    %c0_11 = arith.constant 0 : index
    %36 = vector.load %arg5[%c0_10, %c0_11] : memref<1x256xf32, #tpu.memory_space<vmem>>, vector<1x256xf32>
    tpu.vector_store %arg5[%c0_10, %c0_11], %35 {strides = array<i32>} : memref<1x256xf32, #tpu.memory_space<vmem>>, vector<1x256xf32>,
    return
  }
  func.func @transform_0(%arg0: i32) -> (i32, i32) {
    %c0_i32 = arith.constant 0 : i32
    %c0_i32_0 = arith.constant 0 : i32
    return %c0_i32, %arg0 : i32, i32
  }
  func.func @transform_1(%arg0: i32) -> (i32, i32) {
    %c0_i32 = arith.constant 0 : i32
    %c0_i32_0 = arith.constant 0 : i32
    %c0_i32_1 = arith.constant 0 : i32
    return %c0_i32, %c0_i32_0 : i32, i32
  }
  func.func @transform_2(%arg0: i32) -> (i32, i32) {
    %c0_i32 = arith.constant 0 : i32
    %c0_i32_0 = arith.constant 0 : i32
    %c0_i32_1 = arith.constant 0 : i32
    return %c0_i32, %c0_i32_0 : i32, i32
  }
  func.func @transform_3(%arg0: i32) -> (i32, i32) {
    %c0_i32 = arith.constant 0 : i32
    %c0_i32_0 = arith.constant 0 : i32
    %c0_i32_1 = arith.constant 0 : i32
    return %c0_i32, %c0_i32_0 : i32, i32
  }
  func.func @transform_4(%arg0: i32) -> (i32, i32) {
    %c0_i32 = arith.constant 0 : i32
    %c0_i32_0 = arith.constant 0 : i32
    return %c0_i32, %arg0 : i32, i32
  }
}

</mosaic_0001>

<llo_original>
// kernel: tpu_custom_call.1
$region0: #{tpu_custom_call.1}
  #allocation0 [shape = 'u32[]', space=smem, size = 0x4, offset = 0x4, fixed_abs, tag = 'smem constant byte address 0x4 - core index']
  #allocation1 [shape = 'u32[144,128]{1,0:T(1,128)}', space=vmem, size = 0x12000, scoped, tag = 'internal scratch']
  %s0 = inlined_call_operand.vmem [shape: f32[4,256], index: 0, kind: input, shape index: {}]
  %s1 = inlined_call_operand.vmem [shape: f32[32,4], index: 1, kind: input, shape index: {}]
  %s2 = inlined_call_operand.vmem [shape: f32[32,32], index: 2, kind: input, shape index: {}]
  %s3 = inlined_call_operand.vmem [shape: f32[32,1], index: 3, kind: input, shape index: {}]
  %s4 = inlined_call_operand.hbm [shape: f32[1,256], index: 4, kind: output, shape index: {}]
  %s5 = sld [smem:[#allocation0]]
  $region26: #{tpu_custom_call.1} parent=0
    _
  %s7 = ssub.s32 1, %s5
  %s8 = scalar_select 0, %s7, %s5
  $region1: #{tpu_custom_call.1} parent=0
    #allocation2 [shape = 'u8[1024]{0}', space=vmem, size = 0x400, scoped, tag = 'output window, operand 0, single buffered']
    #allocation3 [shape = 's32[1]{0}', space=sflag, size = 0x4, scoped, tag = 'scoped memory for tpu_custom_call.1']
    %9 = vsyncpa [#allocation3], 0
    // Predicated region
    $region2: #{tpu_custom_call.1} parent=1 // pred_check
      _
    $region3: #{tpu_custom_call.1} parent=1 // pred_check_branch
      %11 = sbr.rel (0) target = $region5
    $region4: #{tpu_custom_call.1} parent=1 // pred_region
      _
    $region5: #{tpu_custom_call.1} parent=1 // pred_fallthru
      _
    // Predicated region
    $region6: #{tpu_custom_call.1} parent=1 // pred_check
      _
    $region7: #{tpu_custom_call.1} parent=1 // pred_check_branch
      %13 = sbr.rel (0) target = $region9
    $region8: #{tpu_custom_call.1} parent=1 // pred_region
      _
    $region9: #{tpu_custom_call.1} parent=1 // pred_fallthru
      _
    // Predicated region
    $region10: #{tpu_custom_call.1} parent=1 // pred_check
      _
    $region11: #{tpu_custom_call.1} parent=1 // pred_check_branch
      %15 = sbr.rel (0) target = $region13
    $region12: #{tpu_custom_call.1} parent=1 // pred_region
      _
    $region13: #{tpu_custom_call.1} parent=1 // pred_fallthru
      _
    // Predicated region
    $region14: #{tpu_custom_call.1} parent=1 // pred_check
      _
    $region15: #{tpu_custom_call.1} parent=1 // pred_check_branch
      %17 = sbr.rel (0) target = $region17
    $region16: #{tpu_custom_call.1} parent=1 // pred_region
      _
    $region17: #{tpu_custom_call.1} parent=1 // pred_fallthru
      _
    %v18 = vld [vmem:[%s0] sm:$0xff]
    %v19 = vld [vmem:[%s1] sm:$0xff]
    %v20 = vld [vmem:[%s1 + $0x8] sm:$0xff]
    %v21 = vld [vmem:[%s1 + $0x10] sm:$0xff]
    %v22 = vld [vmem:[%s1 + $0x18] sm:$0xff]
    %24 = vset.pattern.permute.xlu0 0
    %25 = vperm.xlu0 %24, %v19
    %v26 = vpop.permute.xlu0 %25
    %29 = vset.pattern.permute.xlu0 0
    %30 = vperm.xlu0 %29, %v20
    %v31 = vpop.permute.xlu0 %30
    %34 = vset.pattern.permute.xlu0 0
    %35 = vperm.xlu0 %34, %v21
    %v36 = vpop.permute.xlu0 %35
    %39 = vset.pattern.permute.xlu0 0
    %40 = vperm.xlu0 %39, %v22
    %v41 = vpop.permute.xlu0 %40
    %v44 = vlaneseq
    %v45 = vshrl.u32 %v44, 7
    %v46 = vsub.s32 0, %v45
    %v47 = vrot.slane %v18, %v46
    %v48 = vlaneseq
    %v49 = vshrl.u32 %v48, 7
    %v50 = vsub.s32 4, %v49
    %v51 = vrot.slane %v18, %v50
    %v54 = vlaneseq
    %v55 = vshrl.u32 %v54, 7
    %v56 = vsub.s32 0, %v55
    %v57 = vrot.slane %v47, %v56
    %v58 = vlaneseq
    %v59 = vshrl.u32 %v58, 7
    %v60 = vsub.s32 0, %v59
    %v61 = vrot.slane %v51, %v60
    %v62 = vmul.f32 %v26, %v57
    %v63 = vmul.f32 %v26, %v61
    %v64 = vmul.f32 %v31, %v57
    %v65 = vmul.f32 %v31, %v61
    %v66 = vmul.f32 %v36, %v57
    %v67 = vmul.f32 %v36, %v61
    %v68 = vmul.f32 %v41, %v57
    %v69 = vmul.f32 %v41, %v61
    %70 = vset.pattern.permute.xlu0 1
    %71 = vperm.xlu0 %70, %v19
    %v72 = vpop.permute.xlu0 %71
    %74 = vset.pattern.permute.xlu0 1
    %75 = vperm.xlu0 %74, %v20
    %v76 = vpop.permute.xlu0 %75
    %78 = vset.pattern.permute.xlu0 1
    %79 = vperm.xlu0 %78, %v21
    %v80 = vpop.permute.xlu0 %79
    %82 = vset.pattern.permute.xlu0 1
    %83 = vperm.xlu0 %82, %v22
    %v84 = vpop.permute.xlu0 %83
    %v86 = vlaneseq
    %v87 = vshrl.u32 %v86, 7
    %v88 = vsub.s32 1, %v87
    %v89 = vrot.slane %v18, %v88
    %v90 = vlaneseq
    %v91 = vshrl.u32 %v90, 7
    %v92 = vsub.s32 5, %v91
    %v93 = vrot.slane %v18, %v92
    %v96 = vlaneseq
    %v97 = vshrl.u32 %v96, 7
    %v98 = vsub.s32 1, %v97
    %v99 = vrot.slane %v89, %v98
    %v100 = vlaneseq
    %v101 = vshrl.u32 %v100, 7
    %v102 = vsub.s32 1, %v101
    %v103 = vrot.slane %v93, %v102
    %v104 = vmul.f32 %v72, %v99
    %v105 = vmul.f32 %v72, %v103
    %v106 = vmul.f32 %v76, %v99
    %v107 = vmul.f32 %v76, %v103
    %v108 = vmul.f32 %v80, %v99
    %v109 = vmul.f32 %v80, %v103
    %v110 = vmul.f32 %v84, %v99
    %v111 = vmul.f32 %v84, %v103
    %v112 = vadd.f32 %v62, %v104
    %v113 = vadd.f32 %v63, %v105
    %v114 = vadd.f32 %v64, %v106
    %v115 = vadd.f32 %v65, %v107
    %v116 = vadd.f32 %v66, %v108
    %v117 = vadd.f32 %v67, %v109
    %v118 = vadd.f32 %v68, %v110
    %v119 = vadd.f32 %v69, %v111
    %120 = vset.pattern.permute.xlu0 2
    %121 = vperm.xlu0 %120, %v19
    %v122 = vpop.permute.xlu0 %121
    %124 = vset.pattern.permute.xlu0 2
    %125 = vperm.xlu0 %124, %v20
    %v126 = vpop.permute.xlu0 %125
    %128 = vset.pattern.permute.xlu0 2
    %129 = vperm.xlu0 %128, %v21
    %v130 = vpop.permute.xlu0 %129
    %132 = vset.pattern.permute.xlu0 2
    %133 = vperm.xlu0 %132, %v22
    %v134 = vpop.permute.xlu0 %133
    %v136 = vlaneseq
    %v137 = vshrl.u32 %v136, 7
    %v138 = vsub.s32 2, %v137
    %v139 = vrot.slane %v18, %v138
    %v140 = vlaneseq
    %v141 = vshrl.u32 %v140, 7
    %v142 = vsub.s32 6, %v141
    %v143 = vrot.slane %v18, %v142
    %v146 = vlaneseq
    %v147 = vshrl.u32 %v146, 7
    %v148 = vsub.s32 2, %v147
    %v149 = vrot.slane %v139, %v148
    %v150 = vlaneseq
    %v151 = vshrl.u32 %v150, 7
    %v152 = vsub.s32 2, %v151
    %v153 = vrot.slane %v143, %v152
    %v154 = vmul.f32 %v122, %v149
    %v155 = vmul.f32 %v122, %v153
    %v156 = vmul.f32 %v126, %v149
    %v157 = vmul.f32 %v126, %v153
    %v158 = vmul.f32 %v130, %v149
    %v159 = vmul.f32 %v130, %v153
    %v160 = vmul.f32 %v134, %v149
    %v161 = vmul.f32 %v134, %v153
    %v162 = vadd.f32 %v112, %v154
    %v163 = vadd.f32 %v113, %v155
    %v164 = vadd.f32 %v114, %v156
    %v165 = vadd.f32 %v115, %v157
    %v166 = vadd.f32 %v116, %v158
    %v167 = vadd.f32 %v117, %v159
    %v168 = vadd.f32 %v118, %v160
    %v169 = vadd.f32 %v119, %v161
    %170 = vset.pattern.permute.xlu0 3
    %171 = vperm.xlu0 %170, %v19
    %v172 = vpop.permute.xlu0 %171
    %174 = vset.pattern.permute.xlu0 3
    %175 = vperm.xlu0 %174, %v20
    %v176 = vpop.permute.xlu0 %175
    %178 = vset.pattern.permute.xlu0 3
    %179 = vperm.xlu0 %178, %v21
    %v180 = vpop.permute.xlu0 %179
    %182 = vset.pattern.permute.xlu0 3
    %183 = vperm.xlu0 %182, %v22
    %v184 = vpop.permute.xlu0 %183
    %v186 = vlaneseq
    %v187 = vshrl.u32 %v186, 7
    %v188 = vsub.s32 3, %v187
    %v189 = vrot.slane %v18, %v188
    %v190 = vlaneseq
    %v191 = vshrl.u32 %v190, 7
    %v192 = vsub.s32 7, %v191
    %v193 = vrot.slane %v18, %v192
    %v196 = vlaneseq
    %v197 = vshrl.u32 %v196, 7
    %v198 = vsub.s32 3, %v197
    %v199 = vrot.slane %v189, %v198
    %v200 = vlaneseq
    %v201 = vshrl.u32 %v200, 7
    %v202 = vsub.s32 3, %v201
    %v203 = vrot.slane %v193, %v202
    %v204 = vmul.f32 %v172, %v199
    %v205 = vmul.f32 %v172, %v203
    %v206 = vmul.f32 %v176, %v199
    %v207 = vmul.f32 %v176, %v203
    %v208 = vmul.f32 %v180, %v199
    %v209 = vmul.f32 %v180, %v203
    %v210 = vmul.f32 %v184, %v199
    %v211 = vmul.f32 %v184, %v203
    %v212 = vadd.f32 %v162, %v204
    %v213 = vadd.f32 %v163, %v205
    %v214 = vadd.f32 %v164, %v206
    %v215 = vadd.f32 %v165, %v207
    %v216 = vadd.f32 %v166, %v208
    %v217 = vadd.f32 %v167, %v209
    %v218 = vadd.f32 %v168, %v210
    %v219 = vadd.f32 %v169, %v211
    %v220 = vmax.f32 %v212, 0.0
    %v221 = vmax.f32 %v213, 0.0
    %v222 = vmax.f32 %v214, 0.0
    %v223 = vmax.f32 %v215, 0.0
    %v224 = vmax.f32 %v216, 0.0
    %v225 = vmax.f32 %v217, 0.0
    %v226 = vmax.f32 %v218, 0.0
    %v227 = vmax.f32 %v219, 0.0
    %v228 = vld [vmem:[%s2] sm:$0xff]
    %v229 = vld [vmem:[%s2 + $0x8] sm:$0xff]
    %v230 = vld [vmem:[%s2 + $0x10] sm:$0xff]
    %v231 = vld [vmem:[%s2 + $0x18] sm:$0xff]
    %vm232 = vcmask 261120
    %v234 = vsel %vm232, %v228, 0
    %v237 = vsel %vm232, %v229, 0
    %v240 = vsel %vm232, %v230, 0
    %v243 = vsel %vm232, %v231, 0
    %v245 = vand.u32 %v221, 4294901760
    %246 = vmatprep.subr.mxu0 %v245
    %v247 = vand.u32 %v220, 4294901760
    %248 = vmatpush1.msra.mxu0 %v247
    %v249 = vand.u32 %v223, 4294901760
    %250 = vmatprep.subr.mxu0 %v249
    %v251 = vand.u32 %v222, 4294901760
    %252 = vmatpush1.msra.mxu0 %v251
    %v253 = vand.u32 %v225, 4294901760
    %254 = vmatprep.subr.mxu0 %v253
    %v255 = vand.u32 %v224, 4294901760
    %256 = vmatpush1.msra.mxu0 %v255
    %v257 = vand.u32 %v227, 4294901760
    %258 = vmatprep.subr.mxu0 %v257
    %v259 = vand.u32 %v226, 4294901760
    %260 = vmatpush1.msra.mxu0 %v259
    %261 = vmatprep.subr.mxu0 0.0
    %262 = vmatpush1.msra.mxu0 0.0
    %263 = vmatprep.subr.mxu0 0.0
    %264 = vmatpush1.msra.mxu0 0.0
    %265 = vmatprep.subr.mxu0 0.0
    %266 = vmatpush1.msra.mxu0 0.0
    %267 = vmatprep.subr.mxu0 0.0
    %268 = vmatpush1.msra.mxu0 0.0
    %269 = vmatprep.subr.mxu0 0.0
    %270 = vmatpush1.msra.mxu0 0.0
    %271 = vmatprep.subr.mxu0 0.0
    %272 = vmatpush1.msra.mxu0 0.0
    %273 = vmatprep.subr.mxu0 0.0
    %274 = vmatpush1.msra.mxu0 0.0
    %275 = vmatprep.subr.mxu0 0.0
    %276 = vmatpush1.msra.mxu0 0.0
    %277 = vmatprep.subr.mxu0 0.0
    %278 = vmatpush1.msra.mxu0 0.0
    %279 = vmatprep.subr.mxu0 0.0
    %280 = vmatpush1.msra.mxu0 0.0
    %281 = vmatprep.subr.mxu0 0.0
    %282 = vmatpush1.msra.mxu0 0.0
    %283 = vmatprep.subr.mxu0 0.0
    %284 = vmatpush1.msra.mxu0 0.0
    %285 = vmatprep.subr.mxu0 0.0
    %286 = vmatpush1.msra.mxu0 0.0
    %287 = vmatprep.subr.mxu0 0.0
    %288 = vmatpush1.msra.mxu0 0.0
    %289 = vmatprep.subr.mxu0 0.0
    %290 = vmatpush1.msra.mxu0 0.0
    %291 = vmatprep.subr.mxu0 0.0
    %292 = vmatpush1.msra.mxu0 0.0
    %293 = vmatprep.subr.mxu0 0.0
    %294 = vmatpush1.msra.mxu0 0.0
    %295 = vmatprep.subr.mxu0 0.0
    %296 = vmatpush1.msra.mxu0 0.0
    %297 = vmatprep.subr.mxu0 0.0
    %298 = vmatpush1.msra.mxu0 0.0
    %299 = vmatprep.subr.mxu0 0.0
    %300 = vmatpush1.msra.mxu0 0.0
    %301 = vmatprep.subr.mxu0 0.0
    %302 = vmatpush1.msra.mxu0 0.0
    %303 = vmatprep.subr.mxu0 0.0
    %304 = vmatpush1.msra.mxu0 0.0
    %305 = vmatprep.subr.mxu0 0.0
    %306 = vmatpush1.msra.mxu0 0.0
    %307 = vmatprep.subr.mxu0 0.0
    %308 = vmatpush1.msra.mxu0 0.0
    %309 = vmatprep.subr.mxu0 0.0
    %310 = vmatpush1.msra.mxu0 0.0
    %311 = vmatprep.subr.mxu0 0.0
    %312 = vmatpush1.msra.mxu0 0.0
    %313 = vmatprep.subr.mxu0 0.0
    %314 = vmatpush1.msra.mxu0 0.0
    %315 = vmatprep.subr.mxu0 0.0
    %316 = vmatpush1.msra.mxu0 0.0
    %317 = vmatprep.mubr.f32.mxu0 0.0
    %v318 = vand.u32 %v234, 4294901760
    %v319 = vsub.f32 %v234, %v318
    %v320 = vand.u32 %v319, 4294901760
    %v321 = vsub.f32 %v319, %v320
    %v322 = vand.u32 %v321, 4294901760
    %323 = vmatmul.mubr.f32.gmra.mrb[0].mxu0 %v322
    %v324 = vpop.f32.mrb[0].mxu0
    %v325 = vadd.f32 0.0, %v324
    %v326 = vpop.f32.mrb[0].mxu0
    %v327 = vadd.f32 0.0, %v326
    %328 = vmatprep.mubr.f32.mxu0 0.0
    %v329 = vand.u32 %v237, 4294901760
    %v330 = vsub.f32 %v237, %v329
    %v331 = vand.u32 %v330, 4294901760
    %v332 = vsub.f32 %v330, %v331
    %v333 = vand.u32 %v332, 4294901760
    %334 = vmatmul.mubr.f32.gmra.mrb[0].mxu0 %v333
    %v335 = vpop.f32.mrb[0].mxu0
    %v336 = vadd.f32 0.0, %v335
    %v337 = vpop.f32.mrb[0].mxu0
    %v338 = vadd.f32 0.0, %v337
    %339 = vmatprep.mubr.f32.mxu0 0.0
    %v340 = vand.u32 %v240, 4294901760
    %v341 = vsub.f32 %v240, %v340
    %v342 = vand.u32 %v341, 4294901760
    %v343 = vsub.f32 %v341, %v342
    %v344 = vand.u32 %v343, 4294901760
    %345 = vmatmul.mubr.f32.gmra.mrb[0].mxu0 %v344
    %v346 = vpop.f32.mrb[0].mxu0
    %v347 = vadd.f32 0.0, %v346
    %v348 = vpop.f32.mrb[0].mxu0
    %v349 = vadd.f32 0.0, %v348
    %350 = vmatprep.mubr.f32.mxu0 0.0
    %v351 = vand.u32 %v243, 4294901760
    %v352 = vsub.f32 %v243, %v351
    %v353 = vand.u32 %v352, 4294901760
    %v354 = vsub.f32 %v352, %v353
    %v355 = vand.u32 %v354, 4294901760
    %356 = vmatmul.mubr.f32.gmra.mrb[0].mxu0 %v355
    %v357 = vpop.f32.mrb[0].mxu0
    %v358 = vadd.f32 0.0, %v357
    %v359 = vpop.f32.mrb[0].mxu0
    %v360 = vadd.f32 0.0, %v359
    %361 = vdwg.mxu0
    %v362 = vand.u32 %v221, 4294901760
    %v363 = vsub.f32 %v221, %v362
    %v364 = vand.u32 %v363, 4294901760
    %v365 = vsub.f32 %v363, %v364
    %v366 = vand.u32 %v365, 4294901760
    %367 = vmatprep.subr.mxu0 %v366
    %v368 = vand.u32 %v220, 4294901760
    %v369 = vsub.f32 %v220, %v368
    %v370 = vand.u32 %v369, 4294901760
    %v371 = vsub.f32 %v369, %v370
    %v372 = vand.u32 %v371, 4294901760
    %373 = vmatpush1.msra.mxu0 %v372
    %v374 = vand.u32 %v223, 4294901760
    %v375 = vsub.f32 %v223, %v374
    %v376 = vand.u32 %v375, 4294901760
    %v377 = vsub.f32 %v375, %v376
    %v378 = vand.u32 %v377, 4294901760
    %379 = vmatprep.subr.mxu0 %v378
    %v380 = vand.u32 %v222, 4294901760
    %v381 = vsub.f32 %v222, %v380
    %v382 = vand.u32 %v381, 4294901760
    %v383 = vsub.f32 %v381, %v382
    %v384 = vand.u32 %v383, 4294901760
    %385 = vmatpush1.msra.mxu0 %v384
    %v386 = vand.u32 %v225, 4294901760
    %v387 = vsub.f32 %v225, %v386
    %v388 = vand.u32 %v387, 4294901760
    %v389 = vsub.f32 %v387, %v388
    %v390 = vand.u32 %v389, 4294901760
    %391 = vmatprep.subr.mxu0 %v390
    %v392 = vand.u32 %v224, 4294901760
    %v393 = vsub.f32 %v224, %v392
    %v394 = vand.u32 %v393, 4294901760
    %v395 = vsub.f32 %v393, %v394
    %v396 = vand.u32 %v395, 4294901760
    %397 = vmatpush1.msra.mxu0 %v396
    %v398 = vand.u32 %v227, 4294901760
    %v399 = vsub.f32 %v227, %v398
    %v400 = vand.u32 %v399, 4294901760
    %v401 = vsub.f32 %v399, %v400
    %v402 = vand.u32 %v401, 4294901760
    %403 = vmatprep.subr.mxu0 %v402
    %v404 = vand.u32 %v226, 4294901760
    %v405 = vsub.f32 %v226, %v404
    %v406 = vand.u32 %v405, 4294901760
    %v407 = vsub.f32 %v405, %v406
    %v408 = vand.u32 %v407, 4294901760
    %409 = vmatpush1.msra.mxu0 %v408
    %410 = vmatprep.subr.mxu0 0.0
    %411 = vmatpush1.msra.mxu0 0.0
    %412 = vmatprep.subr.mxu0 0.0
    %413 = vmatpush1.msra.mxu0 0.0
    %414 = vmatprep.subr.mxu0 0.0
    %415 = vmatpush1.msra.mxu0 0.0
    %416 = vmatprep.subr.mxu0 0.0
    %417 = vmatpush1.msra.mxu0 0.0
    %418 = vmatprep.subr.mxu0 0.0
    %419 = vmatpush1.msra.mxu0 0.0
    %420 = vmatprep.subr.mxu0 0.0
    %421 = vmatpush1.msra.mxu0 0.0
    %422 = vmatprep.subr.mxu0 0.0
    %423 = vmatpush1.msra.mxu0 0.0
    %424 = vmatprep.subr.mxu0 0.0
    %425 = vmatpush1.msra.mxu0 0.0
    %426 = vmatprep.subr.mxu0 0.0
    %427 = vmatpush1.msra.mxu0 0.0
    %428 = vmatprep.subr.mxu0 0.0
    %429 = vmatpush1.msra.mxu0 0.0
    %430 = vmatprep.subr.mxu0 0.0
    %431 = vmatpush1.msra.mxu0 0.0
    %432 = vmatprep.subr.mxu0 0.0
    %433 = vmatpush1.msra.mxu0 0.0
    %434 = vmatprep.subr.mxu0 0.0
    %435 = vmatpush1.msra.mxu0 0.0
    %436 = vmatprep.subr.mxu0 0.0
    %437 = vmatpush1.msra.mxu0 0.0
    %438 = vmatprep.subr.mxu0 0.0
    %439 = vmatpush1.msra.mxu0 0.0
    %440 = vmatprep.subr.mxu0 0.0
    %441 = vmatpush1.msra.mxu0 0.0
    %442 = vmatprep.subr.mxu0 0.0
    %443 = vmatpush1.msra.mxu0 0.0
    %444 = vmatprep.subr.mxu0 0.0
    %445 = vmatpush1.msra.mxu0 0.0
    %446 = vmatprep.subr.mxu0 0.0
    %447 = vmatpush1.msra.mxu0 0.0
    %448 = vmatprep.subr.mxu0 0.0
    %449 = vmatpush1.msra.mxu0 0.0
    %450 = vmatprep.subr.mxu0 0.0
    %451 = vmatpush1.msra.mxu0 0.0
    %452 = vmatprep.subr.mxu0 0.0
    %453 = vmatpush1.msra.mxu0 0.0
    %454 = vmatprep.subr.mxu0 0.0
    %455 = vmatpush1.msra.mxu0 0.0
    %456 = vmatprep.subr.mxu0 0.0
    %457 = vmatpush1.msra.mxu0 0.0
    %458 = vmatprep.subr.mxu0 0.0
    %459 = vmatpush1.msra.mxu0 0.0
    %460 = vmatprep.subr.mxu0 0.0
    %461 = vmatpush1.msra.mxu0 0.0
    %462 = vmatprep.subr.mxu0 0.0
    %463 = vmatpush1.msra.mxu0 0.0
    %464 = vmatprep.subr.mxu0 0.0
    %465 = vmatpush1.msra.mxu0 0.0
    %466 = vmatprep.mubr.f32.mxu0 0.0
    %v467 = vand.u32 %v234, 4294901760
    %468 = vmatmul.mubr.f32.gmra.mrb[0].mxu0 %v467
    %v469 = vpop.f32.mrb[0].mxu0
    %v470 = vadd.f32 %v325, %v469
    %v471 = vpop.f32.mrb[0].mxu0
    %v472 = vadd.f32 %v327, %v471
    %473 = vmatprep.mubr.f32.mxu0 0.0
    %v474 = vand.u32 %v237, 4294901760
    %475 = vmatmul.mubr.f32.gmra.mrb[0].mxu0 %v474
    %v476 = vpop.f32.mrb[0].mxu0
    %v477 = vadd.f32 %v336, %v476
    %v478 = vpop.f32.mrb[0].mxu0
    %v479 = vadd.f32 %v338, %v478
    %480 = vmatprep.mubr.f32.mxu0 0.0
    %v481 = vand.u32 %v240, 4294901760
    %482 = vmatmul.mubr.f32.gmra.mrb[0].mxu0 %v481
    %v483 = vpop.f32.mrb[0].mxu0
    %v484 = vadd.f32 %v347, %v483
    %v485 = vpop.f32.mrb[0].mxu0
    %v486 = vadd.f32 %v349, %v485
    %487 = vmatprep.mubr.f32.mxu0 0.0
    %v488 = vand.u32 %v243, 4294901760
    %489 = vmatmul.mubr.f32.gmra.mrb[0].mxu0 %v488
    %v490 = vpop.f32.mrb[0].mxu0
    %v491 = vadd.f32 %v358, %v490
    %v492 = vpop.f32.mrb[0].mxu0
    %v493 = vadd.f32 %v360, %v492
    %494 = vdwg.mxu0
    %v495 = vand.u32 %v221, 4294901760
    %v496 = vsub.f32 %v221, %v495
    %497 = vmatprep.subr.mxu0 %v496
    %v498 = vand.u32 %v220, 4294901760
    %v499 = vsub.f32 %v220, %v498
    %500 = vmatpush1.msra.mxu0 %v499
    %v501 = vand.u32 %v223, 4294901760
    %v502 = vsub.f32 %v223, %v501
    %503 = vmatprep.subr.mxu0 %v502
    %v504 = vand.u32 %v222, 4294901760
    %v505 = vsub.f32 %v222, %v504
    %506 = vmatpush1.msra.mxu0 %v505
    %v507 = vand.u32 %v225, 4294901760
    %v508 = vsub.f32 %v225, %v507
    %509 = vmatprep.subr.mxu0 %v508
    %v510 = vand.u32 %v224, 4294901760
    %v511 = vsub.f32 %v224, %v510
    %512 = vmatpush1.msra.mxu0 %v511
    %v513 = vand.u32 %v227, 4294901760
    %v514 = vsub.f32 %v227, %v513
    %515 = vmatprep.subr.mxu0 %v514
    %v516 = vand.u32 %v226, 4294901760
    %v517 = vsub.f32 %v226, %v516
    %518 = vmatpush1.msra.mxu0 %v517
    %519 = vmatprep.subr.mxu0 0.0
    %520 = vmatpush1.msra.mxu0 0.0
    %521 = vmatprep.subr.mxu0 0.0
    %522 = vmatpush1.msra.mxu0 0.0
    %523 = vmatprep.subr.mxu0 0.0
    %524 = vmatpush1.msra.mxu0 0.0
    %525 = vmatprep.subr.mxu0 0.0
    %526 = vmatpush1.msra.mxu0 0.0
    %527 = vmatprep.subr.mxu0 0.0
    %528 = vmatpush1.msra.mxu0 0.0
    %529 = vmatprep.subr.mxu0 0.0
    %530 = vmatpush1.msra.mxu0 0.0
    %531 = vmatprep.subr.mxu0 0.0
    %532 = vmatpush1.msra.mxu0 0.0
    %533 = vmatprep.subr.mxu0 0.0
    %534 = vmatpush1.msra.mxu0 0.0
    %535 = vmatprep.subr.mxu0 0.0
    %536 = vmatpush1.msra.mxu0 0.0
    %537 = vmatprep.subr.mxu0 0.0
    %538 = vmatpush1.msra.mxu0 0.0
    %539 = vmatprep.subr.mxu0 0.0
    %540 = vmatpush1.msra.mxu0 0.0
    %541 = vmatprep.subr.mxu0 0.0
    %542 = vmatpush1.msra.mxu0 0.0
    %543 = vmatprep.subr.mxu0 0.0
    %544 = vmatpush1.msra.mxu0 0.0
    %545 = vmatprep.subr.mxu0 0.0
    %546 = vmatpush1.msra.mxu0 0.0
    %547 = vmatprep.subr.mxu0 0.0
    %548 = vmatpush1.msra.mxu0 0.0
    %549 = vmatprep.subr.mxu0 0.0
    %550 = vmatpush1.msra.mxu0 0.0
    %551 = vmatprep.subr.mxu0 0.0
    %552 = vmatpush1.msra.mxu0 0.0
    %553 = vmatprep.subr.mxu0 0.0
    %554 = vmatpush1.msra.mxu0 0.0
    %555 = vmatprep.subr.mxu0 0.0
    %556 = vmatpush1.msra.mxu0 0.0
    %557 = vmatprep.subr.mxu0 0.0
    %558 = vmatpush1.msra.mxu0 0.0
    %559 = vmatprep.subr.mxu0 0.0
    %560 = vmatpush1.msra.mxu0 0.0
    %561 = vmatprep.subr.mxu0 0.0
    %562 = vmatpush1.msra.mxu0 0.0
    %563 = vmatprep.subr.mxu0 0.0
    %564 = vmatpush1.msra.mxu0 0.0
    %565 = vmatprep.subr.mxu0 0.0
    %566 = vmatpush1.msra.mxu0 0.0
    %567 = vmatprep.subr.mxu0 0.0
    %568 = vmatpush1.msra.mxu0 0.0
    %569 = vmatprep.subr.mxu0 0.0
    %570 = vmatpush1.msra.mxu0 0.0
    %571 = vmatprep.subr.mxu0 0.0
    %572 = vmatpush1.msra.mxu0 0.0
    %573 = vmatprep.subr.mxu0 0.0
    %574 = vmatpush1.msra.mxu0 0.0
    %575 = vmatprep.mubr.f32.mxu0 0.0
    %v576 = vand.u32 %v234, 4294901760
    %v577 = vsub.f32 %v234, %v576
    %578 = vmatmul.mubr.f32.gmra.mrb[0].mxu0 %v577
    %v579 = vpop.f32.mrb[0].mxu0
    %v580 = vadd.f32 %v470, %v579
    %v581 = vpop.f32.mrb[0].mxu0
    %v582 = vadd.f32 %v472, %v581
    %583 = vmatprep.mubr.f32.mxu0 0.0
    %v584 = vand.u32 %v237, 4294901760
    %v585 = vsub.f32 %v237, %v584
    %586 = vmatmul.mubr.f32.gmra.mrb[0].mxu0 %v585
    %v587 = vpop.f32.mrb[0].mxu0
    %v588 = vadd.f32 %v477, %v587
    %v589 = vpop.f32.mrb[0].mxu0
    %v590 = vadd.f32 %v479, %v589
    %591 = vmatprep.mubr.f32.mxu0 0.0
    %v592 = vand.u32 %v240, 4294901760
    %v593 = vsub.f32 %v240, %v592
    %594 = vmatmul.mubr.f32.gmra.mrb[0].mxu0 %v593
    %v595 = vpop.f32.mrb[0].mxu0
    %v596 = vadd.f32 %v484, %v595
    %v597 = vpop.f32.mrb[0].mxu0
    %v598 = vadd.f32 %v486, %v597
    %599 = vmatprep.mubr.f32.mxu0 0.0
    %v600 = vand.u32 %v243, 4294901760
    %v601 = vsub.f32 %v243, %v600
    %602 = vmatmul.mubr.f32.gmra.mrb[0].mxu0 %v601
    %v603 = vpop.f32.mrb[0].mxu0
    %v604 = vadd.f32 %v491, %v603
    %v605 = vpop.f32.mrb[0].mxu0
    %v606 = vadd.f32 %v493, %v605
    %607 = vdwg.mxu0
    %v608 = vand.u32 %v221, 4294901760
    %609 = vmatprep.subr.mxu0 %v608
    %v610 = vand.u32 %v220, 4294901760
    %611 = vmatpush1.msra.mxu0 %v610
    %v612 = vand.u32 %v223, 4294901760
    %613 = vmatprep.subr.mxu0 %v612
    %v614 = vand.u32 %v222, 4294901760
    %615 = vmatpush1.msra.mxu0 %v614
    %v616 = vand.u32 %v225, 4294901760
    %617 = vmatprep.subr.mxu0 %v616
    %v618 = vand.u32 %v224, 4294901760
    %619 = vmatpush1.msra.mxu0 %v618
    %v620 = vand.u32 %v227, 4294901760
    %621 = vmatprep.subr.mxu0 %v620
    %v622 = vand.u32 %v226, 4294901760
    %623 = vmatpush1.msra.mxu0 %v622
    %624 = vmatprep.subr.mxu0 0.0
    %625 = vmatpush1.msra.mxu0 0.0
    %626 = vmatprep.subr.mxu0 0.0
    %627 = vmatpush1.msra.mxu0 0.0
    %628 = vmatprep.subr.mxu0 0.0
    %629 = vmatpush1.msra.mxu0 0.0
    %630 = vmatprep.subr.mxu0 0.0
    %631 = vmatpush1.msra.mxu0 0.0
    %632 = vmatprep.subr.mxu0 0.0
    %633 = vmatpush1.msra.mxu0 0.0
    %634 = vmatprep.subr.mxu0 0.0
    %635 = vmatpush1.msra.mxu0 0.0
    %636 = vmatprep.subr.mxu0 0.0
    %637 = vmatpush1.msra.mxu0 0.0
    %638 = vmatprep.subr.mxu0 0.0
    %639 = vmatpush1.msra.mxu0 0.0
    %640 = vmatprep.subr.mxu0 0.0
    %641 = vmatpush1.msra.mxu0 0.0
    %642 = vmatprep.subr.mxu0 0.0
    %643 = vmatpush1.msra.mxu0 0.0
    %644 = vmatprep.subr.mxu0 0.0
    %645 = vmatpush1.msra.mxu0 0.0
    %646 = vmatprep.subr.mxu0 0.0
    %647 = vmatpush1.msra.mxu0 0.0
    %648 = vmatprep.subr.mxu0 0.0
    %649 = vmatpush1.msra.mxu0 0.0
    %650 = vmatprep.subr.mxu0 0.0
    %651 = vmatpush1.msra.mxu0 0.0
    %652 = vmatprep.subr.mxu0 0.0
    %653 = vmatpush1.msra.mxu0 0.0
    %654 = vmatprep.subr.mxu0 0.0
    %655 = vmatpush1.msra.mxu0 0.0
    %656 = vmatprep.subr.mxu0 0.0
    %657 = vmatpush1.msra.mxu0 0.0
    %658 = vmatprep.subr.mxu0 0.0
    %659 = vmatpush1.msra.mxu0 0.0
    %660 = vmatprep.subr.mxu0 0.0
    %661 = vmatpush1.msra.mxu0 0.0
    %662 = vmatprep.subr.mxu0 0.0
    %663 = vmatpush1.msra.mxu0 0.0
    %664 = vmatprep.subr.mxu0 0.0
    %665 = vmatpush1.msra.mxu0 0.0
    %666 = vmatprep.subr.mxu0 0.0
    %667 = vmatpush1.msra.mxu0 0.0
    %668 = vmatprep.subr.mxu0 0.0
    %669 = vmatpush1.msra.mxu0 0.0
    %670 = vmatprep.subr.mxu0 0.0
    %671 = vmatpush1.msra.mxu0 0.0
    %672 = vmatprep.subr.mxu0 0.0
    %673 = vmatpush1.msra.mxu0 0.0
    %674 = vmatprep.subr.mxu0 0.0
    %675 = vmatpush1.msra.mxu0 0.0
    %676 = vmatprep.subr.mxu0 0.0
    %677 = vmatpush1.msra.mxu0 0.0
    %678 = vmatprep.subr.mxu0 0.0
    %679 = vmatpush1.msra.mxu0 0.0
    %680 = vmatprep.mubr.f32.mxu0 0.0
    %v681 = vand.u32 %v234, 4294901760
    %v682 = vsub.f32 %v234, %v681
    %v683 = vand.u32 %v682, 4294901760
    %684 = vmatmul.mubr.f32.gmra.mrb[0].mxu0 %v683
    %v685 = vpop.f32.mrb[0].mxu0
    %v686 = vadd.f32 %v580, %v685
    %v687 = vpop.f32.mrb[0].mxu0
    %v688 = vadd.f32 %v582, %v687
    %689 = vmatprep.mubr.f32.mxu0 0.0
    %v690 = vand.u32 %v237, 4294901760
    %v691 = vsub.f32 %v237, %v690
    %v692 = vand.u32 %v691, 4294901760
    %693 = vmatmul.mubr.f32.gmra.mrb[0].mxu0 %v692
    %v694 = vpop.f32.mrb[0].mxu0
    %v695 = vadd.f32 %v588, %v694
    %v696 = vpop.f32.mrb[0].mxu0
    %v697 = vadd.f32 %v590, %v696
    %698 = vmatprep.mubr.f32.mxu0 0.0
    %v699 = vand.u32 %v240, 4294901760
    %v700 = vsub.f32 %v240, %v699
    %v701 = vand.u32 %v700, 4294901760
    %702 = vmatmul.mubr.f32.gmra.mrb[0].mxu0 %v701
    %v703 = vpop.f32.mrb[0].mxu0
    %v704 = vadd.f32 %v596, %v703
    %v705 = vpop.f32.mrb[0].mxu0
    %v706 = vadd.f32 %v598, %v705
    %707 = vmatprep.mubr.f32.mxu0 0.0
    %v708 = vand.u32 %v243, 4294901760
    %v709 = vsub.f32 %v243, %v708
    %v710 = vand.u32 %v709, 4294901760
    %711 = vmatmul.mubr.f32.gmra.mrb[0].mxu0 %v710
    %v712 = vpop.f32.mrb[0].mxu0
    %v713 = vadd.f32 %v604, %v712
    %v714 = vpop.f32.mrb[0].mxu0
    %v715 = vadd.f32 %v606, %v714
    %716 = vdwg.mxu0
    %v717 = vand.u32 %v221, 4294901760
    %v718 = vsub.f32 %v221, %v717
    %v719 = vand.u32 %v718, 4294901760
    %720 = vmatprep.subr.mxu0 %v719
    %v721 = vand.u32 %v220, 4294901760
    %v722 = vsub.f32 %v220, %v721
    %v723 = vand.u32 %v722, 4294901760
    %724 = vmatpush1.msra.mxu0 %v723
    %v725 = vand.u32 %v223, 4294901760
    %v726 = vsub.f32 %v223, %v725
    %v727 = vand.u32 %v726, 4294901760
    %728 = vmatprep.subr.mxu0 %v727
    %v729 = vand.u32 %v222, 4294901760
    %v730 = vsub.f32 %v222, %v729
    %v731 = vand.u32 %v730, 4294901760
    %732 = vmatpush1.msra.mxu0 %v731
    %v733 = vand.u32 %v225, 4294901760
    %v734 = vsub.f32 %v225, %v733
    %v735 = vand.u32 %v734, 4294901760
    %736 = vmatprep.subr.mxu0 %v735
    %v737 = vand.u32 %v224, 4294901760
    %v738 = vsub.f32 %v224, %v737
    %v739 = vand.u32 %v738, 4294901760
    %740 = vmatpush1.msra.mxu0 %v739
    %v741 = vand.u32 %v227, 4294901760
    %v742 = vsub.f32 %v227, %v741
    %v743 = vand.u32 %v742, 4294901760
    %744 = vmatprep.subr.mxu0 %v743
    %v745 = vand.u32 %v226, 4294901760
    %v746 = vsub.f32 %v226, %v745
    %v747 = vand.u32 %v746, 4294901760
    %748 = vmatpush1.msra.mxu0 %v747
    %749 = vmatprep.subr.mxu0 0.0
    %750 = vmatpush1.msra.mxu0 0.0
    %751 = vmatprep.subr.mxu0 0.0
    %752 = vmatpush1.msra.mxu0 0.0
    %753 = vmatprep.subr.mxu0 0.0
    %754 = vmatpush1.msra.mxu0 0.0
    %755 = vmatprep.subr.mxu0 0.0
    %756 = vmatpush1.msra.mxu0 0.0
    %757 = vmatprep.subr.mxu0 0.0
    %758 = vmatpush1.msra.mxu0 0.0
    %759 = vmatprep.subr.mxu0 0.0
    %760 = vmatpush1.msra.mxu0 0.0
    %761 = vmatprep.subr.mxu0 0.0
    %762 = vmatpush1.msra.mxu0 0.0
    %763 = vmatprep.subr.mxu0 0.0
    %764 = vmatpush1.msra.mxu0 0.0
    %765 = vmatprep.subr.mxu0 0.0
    %766 = vmatpush1.msra.mxu0 0.0
    %767 = vmatprep.subr.mxu0 0.0
    %768 = vmatpush1.msra.mxu0 0.0
    %769 = vmatprep.subr.mxu0 0.0
    %770 = vmatpush1.msra.mxu0 0.0
    %771 = vmatprep.subr.mxu0 0.0
    %772 = vmatpush1.msra.mxu0 0.0
    %773 = vmatprep.subr.mxu0 0.0
    %774 = vmatpush1.msra.mxu0 0.0
    %775 = vmatprep.subr.mxu0 0.0
    %776 = vmatpush1.msra.mxu0 0.0
    %777 = vmatprep.subr.mxu0 0.0
    %778 = vmatpush1.msra.mxu0 0.0
    %779 = vmatprep.subr.mxu0 0.0
    %780 = vmatpush1.msra.mxu0 0.0
    %781 = vmatprep.subr.mxu0 0.0
    %782 = vmatpush1.msra.mxu0 0.0
    %783 = vmatprep.subr.mxu0 0.0
    %784 = vmatpush1.msra.mxu0 0.0
    %785 = vmatprep.subr.mxu0 0.0
    %786 = vmatpush1.msra.mxu0 0.0
    %787 = vmatprep.subr.mxu0 0.0
    %788 = vmatpush1.msra.mxu0 0.0
    %789 = vmatprep.subr.mxu0 0.0
    %790 = vmatpush1.msra.mxu0 0.0
    %791 = vmatprep.subr.mxu0 0.0
    %792 = vmatpush1.msra.mxu0 0.0
    %793 = vmatprep.subr.mxu0 0.0
    %794 = vmatpush1.msra.mxu0 0.0
    %795 = vmatprep.subr.mxu0 0.0
    %796 = vmatpush1.msra.mxu0 0.0
    %797 = vmatprep.subr.mxu0 0.0
    %798 = vmatpush1.msra.mxu0 0.0
    %799 = vmatprep.subr.mxu0 0.0
    %800 = vmatpush1.msra.mxu0 0.0
    %801 = vmatprep.subr.mxu0 0.0
    %802 = vmatpush1.msra.mxu0 0.0
    %803 = vmatprep.subr.mxu0 0.0
    %804 = vmatpush1.msra.mxu0 0.0
    %805 = vmatprep.mubr.f32.mxu0 0.0
    %v806 = vand.u32 %v234, 4294901760
    %807 = vmatmul.mubr.f32.gmra.mrb[0].mxu0 %v806
    %v808 = vpop.f32.mrb[0].mxu0
    %v809 = vadd.f32 %v686, %v808
    %v810 = vpop.f32.mrb[0].mxu0
    %v811 = vadd.f32 %v688, %v810
    %812 = vmatprep.mubr.f32.mxu0 0.0
    %v813 = vand.u32 %v237, 4294901760
    %814 = vmatmul.mubr.f32.gmra.mrb[0].mxu0 %v813
    %v815 = vpop.f32.mrb[0].mxu0
    %v816 = vadd.f32 %v695, %v815
    %v817 = vpop.f32.mrb[0].mxu0
    %v818 = vadd.f32 %v697, %v817
    %819 = vmatprep.mubr.f32.mxu0 0.0
    %v820 = vand.u32 %v240, 4294901760
    %821 = vmatmul.mubr.f32.gmra.mrb[0].mxu0 %v820
    %v822 = vpop.f32.mrb[0].mxu0
    %v823 = vadd.f32 %v704, %v822
    %v824 = vpop.f32.mrb[0].mxu0
    %v825 = vadd.f32 %v706, %v824
    %826 = vmatprep.mubr.f32.mxu0 0.0
    %v827 = vand.u32 %v243, 4294901760
    %828 = vmatmul.mubr.f32.gmra.mrb[0].mxu0 %v827
    %v829 = vpop.f32.mrb[0].mxu0
    %v830 = vadd.f32 %v713, %v829
    %v831 = vpop.f32.mrb[0].mxu0
    %v832 = vadd.f32 %v715, %v831
    %833 = vdwg.mxu0
    %v834 = vand.u32 %v221, 4294901760
    %835 = vmatprep.subr.mxu0 %v834
    %v836 = vand.u32 %v220, 4294901760
    %837 = vmatpush1.msra.mxu0 %v836
    %v838 = vand.u32 %v223, 4294901760
    %839 = vmatprep.subr.mxu0 %v838
    %v840 = vand.u32 %v222, 4294901760
    %841 = vmatpush1.msra.mxu0 %v840
    %v842 = vand.u32 %v225, 4294901760
    %843 = vmatprep.subr.mxu0 %v842
    %v844 = vand.u32 %v224, 4294901760
    %845 = vmatpush1.msra.mxu0 %v844
    %v846 = vand.u32 %v227, 4294901760
    %847 = vmatprep.subr.mxu0 %v846
    %v848 = vand.u32 %v226, 4294901760
    %849 = vmatpush1.msra.mxu0 %v848
    %850 = vmatprep.subr.mxu0 0.0
    %851 = vmatpush1.msra.mxu0 0.0
    %852 = vmatprep.subr.mxu0 0.0
    %853 = vmatpush1.msra.mxu0 0.0
    %854 = vmatprep.subr.mxu0 0.0
    %855 = vmatpush1.msra.mxu0 0.0
    %856 = vmatprep.subr.mxu0 0.0
    %857 = vmatpush1.msra.mxu0 0.0
    %858 = vmatprep.subr.mxu0 0.0
    %859 = vmatpush1.msra.mxu0 0.0
    %860 = vmatprep.subr.mxu0 0.0
    %861 = vmatpush1.msra.mxu0 0.0
    %862 = vmatprep.subr.mxu0 0.0
    %863 = vmatpush1.msra.mxu0 0.0
    %864 = vmatprep.subr.mxu0 0.0
    %865 = vmatpush1.msra.mxu0 0.0
    %866 = vmatprep.subr.mxu0 0.0
    %867 = vmatpush1.msra.mxu0 0.0
    %868 = vmatprep.subr.mxu0 0.0
    %869 = vmatpush1.msra.mxu0 0.0
    %870 = vmatprep.subr.mxu0 0.0
    %871 = vmatpush1.msra.mxu0 0.0
    %872 = vmatprep.subr.mxu0 0.0
    %873 = vmatpush1.msra.mxu0 0.0
    %874 = vmatprep.subr.mxu0 0.0
    %875 = vmatpush1.msra.mxu0 0.0
    %876 = vmatprep.subr.mxu0 0.0
    %877 = vmatpush1.msra.mxu0 0.0
    %878 = vmatprep.subr.mxu0 0.0
    %879 = vmatpush1.msra.mxu0 0.0
    %880 = vmatprep.subr.mxu0 0.0
    %881 = vmatpush1.msra.mxu0 0.0
    %882 = vmatprep.subr.mxu0 0.0
    %883 = vmatpush1.msra.mxu0 0.0
    %884 = vmatprep.subr.mxu0 0.0
    %885 = vmatpush1.msra.mxu0 0.0
    %886 = vmatprep.subr.mxu0 0.0
    %887 = vmatpush1.msra.mxu0 0.0
    %888 = vmatprep.subr.mxu0 0.0
    %889 = vmatpush1.msra.mxu0 0.0
    %890 = vmatprep.subr.mxu0 0.0
    %891 = vmatpush1.msra.mxu0 0.0
    %892 = vmatprep.subr.mxu0 0.0
    %893 = vmatpush1.msra.mxu0 0.0
    %894 = vmatprep.subr.mxu0 0.0
    %895 = vmatpush1.msra.mxu0 0.0
    %896 = vmatprep.subr.mxu0 0.0
    %897 = vmatpush1.msra.mxu0 0.0
    %898 = vmatprep.subr.mxu0 0.0
    %899 = vmatpush1.msra.mxu0 0.0
    %900 = vmatprep.subr.mxu0 0.0
    %901 = vmatpush1.msra.mxu0 0.0
    %902 = vmatprep.subr.mxu0 0.0
    %903 = vmatpush1.msra.mxu0 0.0
    %904 = vmatprep.subr.mxu0 0.0
    %905 = vmatpush1.msra.mxu0 0.0
    %906 = vmatprep.mubr.f32.mxu0 0.0
    %v907 = vand.u32 %v234, 4294901760
    %908 = vmatmul.mubr.f32.gmra.mrb[0].mxu0 %v907
    %v909 = vpop.f32.mrb[0].mxu0
    %v910 = vadd.f32 %v809, %v909
    %v911 = vpop.f32.mrb[0].mxu0
    %v912 = vadd.f32 %v811, %v911
    %913 = vmatprep.mubr.f32.mxu0 0.0
    %v914 = vand.u32 %v237, 4294901760
    %915 = vmatmul.mubr.f32.gmra.mrb[0].mxu0 %v914
    %v916 = vpop.f32.mrb[0].mxu0
    %v917 = vadd.f32 %v816, %v916
    %v918 = vpop.f32.mrb[0].mxu0
    %v919 = vadd.f32 %v818, %v918
    %920 = vmatprep.mubr.f32.mxu0 0.0
    %v921 = vand.u32 %v240, 4294901760
    %922 = vmatmul.mubr.f32.gmra.mrb[0].mxu0 %v921
    %v923 = vpop.f32.mrb[0].mxu0
    %v924 = vadd.f32 %v823, %v923
    %v925 = vpop.f32.mrb[0].mxu0
    %v926 = vadd.f32 %v825, %v925
    %927 = vmatprep.mubr.f32.mxu0 0.0
    %v928 = vand.u32 %v243, 4294901760
    %929 = vmatmul.mubr.f32.gmra.mrb[0].mxu0 %v928
    %v930 = vpop.f32.mrb[0].mxu0
    %v931 = vadd.f32 %v830, %v930
    %v932 = vpop.f32.mrb[0].mxu0
    %v933 = vadd.f32 %v832, %v932
    %934 = vdwg.mxu0
    %v935 = vmax.f32 %v910, 0.0
    %v936 = vmax.f32 %v912, 0.0
    %v937 = vmax.f32 %v917, 0.0
    %v938 = vmax.f32 %v919, 0.0
    %v939 = vmax.f32 %v924, 0.0
    %v940 = vmax.f32 %v926, 0.0
    %v941 = vmax.f32 %v931, 0.0
    %v942 = vmax.f32 %v933, 0.0
    %v943 = vld [vmem:[%s3] sm:$0xff]
    %v944 = vld [vmem:[%s3 + $0x8] sm:$0xff]
    %v945 = vld [vmem:[%s3 + $0x10] sm:$0xff]
    %v946 = vld [vmem:[%s3 + $0x18] sm:$0xff]
    %948 = vset.pattern.permute.xlu0 0
    %949 = vperm.xlu0 %948, %v943
    %v950 = vpop.permute.xlu0 %949
    %953 = vset.pattern.permute.xlu0 0
    %954 = vperm.xlu0 %953, %v944
    %v955 = vpop.permute.xlu0 %954
    %958 = vset.pattern.permute.xlu0 0
    %959 = vperm.xlu0 %958, %v945
    %v960 = vpop.permute.xlu0 %959
    %963 = vset.pattern.permute.xlu0 0
    %964 = vperm.xlu0 %963, %v946
    %v965 = vpop.permute.xlu0 %964
    %v967 = vmul.f32 %v935, %v950
    %v968 = vmul.f32 %v936, %v950
    %v969 = vmul.f32 %v937, %v955
    %v970 = vmul.f32 %v938, %v955
    %v971 = vmul.f32 %v939, %v960
    %v972 = vmul.f32 %v940, %v960
    %v973 = vmul.f32 %v941, %v965
    %v974 = vmul.f32 %v942, %v965
    %v975 = vadd.f32 %v967, %v969
    %v976 = vadd.f32 %v975, %v971
    %v977 = vadd.f32 %v976, %v973
    %v978 = vrot.slane %v977, 4
    %v979 = vadd.f32 %v977, %v978
    %v980 = vrot.slane %v979, 2
    %v981 = vadd.f32 %v979, %v980
    %v982 = vrot.slane %v981, 1
    %v983 = vadd.f32 %v981, %v982
    %v984 = vadd.f32 %v968, %v970
    %v985 = vadd.f32 %v984, %v972
    %v986 = vadd.f32 %v985, %v974
    %v987 = vrot.slane %v986, 4
    %v988 = vadd.f32 %v986, %v987
    %v989 = vrot.slane %v988, 2
    %v990 = vadd.f32 %v988, %v989
    %v991 = vrot.slane %v990, 1
    %v992 = vadd.f32 %v990, %v991
    %v995 = vcombine.low %v983, %v992
    %v997 = vunpack.c.l.s4 1966171168
    %v998 = vunpack.c.0.s8 %v997
    %v999 = vlaneseq
    %v1000 = vshrl.u32 %v999, 7
    %v1001 = vsub.s32 %v998, %v1000
    %v1002 = vrot.slane %v995, %v1001
    %v1004 = vunpack.c.l.s4 1966171168
    %v1005 = vunpack.c.0.s8 %v1004
    %v1006 = vlaneseq
    %v1007 = vshrl.u32 %v1006, 7
    %v1008 = vsub.s32 %v1005, %v1007
    %v1009 = vrot.slane %v1002, %v1008
    %v1011 = vlaneseq
    %vm1012 = vcmp.ge.s32.totalorder %v1011, 0
    %vm1013 = vcmp.lt.s32.totalorder %v1011, 256
    %vm1014 = vmand %vm1012, %vm1013
    %1015 = vst.msk [vmem:[#allocation2] sm:$0x3] %vm1014, %v1009
    // Predicated region
    $region18: #{tpu_custom_call.1} parent=1 // pred_check
      _
    $region19: #{tpu_custom_call.1} parent=1 // pred_check_branch
      %1017 = sbr.rel (0) target = $region21
    $region20: #{tpu_custom_call.1} parent=1 // pred_region
      %s1019 = ssub.s32 32, 32
      %1020 = vsyncadd [#allocation3], %s1019
      %s1022 = sshll.u32 [#allocation2], 4
      %s1023 = int_to_ptr.vmem [resolvable:$true] %s1022
      %1025 = dma.vmem_to_hbm [thread:$0]  %s1023, 32, %s4, [#allocation3]
    $region21: #{tpu_custom_call.1} parent=1 // pred_fallthru
      _
    // Predicated region
    $region22: #{tpu_custom_call.1} parent=1 // pred_check
      _
    $region23: #{tpu_custom_call.1} parent=1 // pred_check_branch
      %1027 = sbr.rel (0) target = $region25
    $region24: #{tpu_custom_call.1} parent=1 // pred_region
      %1028 = dma.done [#allocation3], 32
    $region25: #{tpu_custom_call.1} parent=1 // pred_fallthru
      _
    %1029 = vsyncpa [#allocation3], 1

</llo_original>
